<compile_context>
chip_gen: v5e
topology: v5e:2x2
jax: 0.10.0
libtpu: 0.0.40
codegen_flags: <defaults>
</compile_context>

<pallas_src>
import math

import jax
import jax.numpy as jnp
from jax.experimental import pallas as pl
from jax.experimental.pallas import tpu as pltpu


def _round_up(x: int, m: int) -> int:
    return ((x + m - 1) // m) * m


def _linear_kernel(x_ref, w_ref, b_ref, o_ref):
    # grid = (b_tiles, n_tiles, k_tiles); k (reduction) is innermost so the
    # output block stays VMEM-resident and acts as the f32 accumulator.
    k = pl.program_id(2)

    @pl.when(k == 0)
    def _():
        # Seed the accumulator with the bias (one branch, no final add step).
        o_ref[...] = jnp.broadcast_to(b_ref[...], o_ref.shape)

    # x: (tb, tk), w: (tn, tk)  ->  contract on dim 1 of both (i.e. x @ w.T).
    # The MXU handles trans_b natively; no transpose is materialized.
    o_ref[...] += jax.lax.dot_general(
        x_ref[...],
        w_ref[...],
        dimension_numbers=(((1,), (1,)), ((), ())),
        preferred_element_type=jnp.float32,
    )


def _plan_nk(K: int, N: int, in_bytes: int):
    """Choose (N_pad, tn, K_pad, tk) -- VMEM-aware, minimal padding."""
    # N (class) dim: never pad tiny heads up to 128.  Only round to lane-dense
    # tiles once N is already >= 128.
    if N < 128:
        tn, N_pad = N, N
    else:
        N128 = _round_up(N, 128)
        tn = min(N128, 512)
        N_pad = _round_up(N128, tn)

    # K (reduction) dim: cap the per-buffer W tile at ~4 MiB so the
    # double-buffered W stream (8 MiB) fits the default scoped-VMEM limit on
    # every generation (v5e 16 MiB, v6e/v7x 32 MiB) with room for x/bias/out.
    w_tile_budget = 4 * 1024 * 1024
    tk_max = max(128, (w_tile_budget // (max(tn, 8) * in_bytes)) // 128 * 128)
    K128 = _round_up(K, 128)
    if K128 <= tk_max:
        tk, K_pad = K128, K128
    else:
        n_k = -(-K128 // tk_max)                 # ceil
        tk = _round_up(-(-K128 // n_k), 128)     # balanced tile, <128 cols waste
        K_pad = tk * n_k
    return N_pad, tn, K_pad, tk


def prepare_single_linear(weight, bias, *, weight_dtype=jnp.float32):
    """One-time weight prep (pad + optional cast), hoisted out of the call path.

    weight : (N, K) float32  (PyTorch nn.Linear layout)
    bias   : (N,)
    weight_dtype : storage/compute dtype for x & W (f32 default; bf16 halves
                   the W HBM stream and VMEM on all generations).
    """
    N, K = weight.shape
    in_bytes = jnp.dtype(weight_dtype).itemsize
    N_pad, tn, K_pad, tk = _plan_nk(K, N, in_bytes)

    w = weight.astype(weight_dtype)
    if (N_pad != N) or (K_pad != K):
        # Zero rows/cols contribute 0 to the contraction.
        w = jnp.pad(w, ((0, N_pad - N), (0, K_pad - K)))
    b = jnp.pad(bias.astype(jnp.float32), (0, N_pad - N)).reshape(1, N_pad)

    plan = dict(K=K, N=N, K_pad=K_pad, N_pad=N_pad, tn=tn, tk=tk,
                weight_dtype=weight_dtype)
    return w, b, plan


def single_linear(x_nchw, w_prep, b_prep, plan):
    """y = Flatten(x) @ weight.T + bias, using prepared weights."""
    B = x_nchw.shape[0]
    K, K_pad = plan["K"], plan["K_pad"]
    N, N_pad = plan["N"], plan["N_pad"]
    tn, tk = plan["tn"], plan["tk"]
    wdt = plan["weight_dtype"]
    assert math.prod(x_nchw.shape[1:]) == K, "x inner dims must equal C*H*W"

    x2d = x_nchw.reshape(B, K)
    if x2d.dtype != wdt:
        x2d = x2d.astype(wdt)
    if K_pad != K:
        x2d = jnp.pad(x2d, ((0, 0), (0, K_pad - K)))

    # Batch tiling: small B is a single full-extent block; large B is split
    # into sublane-aligned panels, giving v7x's second TensorCore an
    # independent parallel axis (no-op on v5e/v6e).
    if B <= 256:
        tb, B_pad = B, B
    else:
        tb = 256
        B_pad = _round_up(B, tb)
    if B_pad != B:
        x2d = jnp.pad(x2d, ((0, B_pad - B), (0, 0)))

    grid = (B_pad // tb, N_pad // tn, K_pad // tk)

    # Explicit VMEM budget (double-buffered x & W streams + resident out/bias),
    # with headroom, capped well under every generation's physical VMEM.
    in_bytes = jnp.dtype(wdt).itemsize
    est = (2 * (max(tn, 8) * tk + max(tb, 8) * tk) * in_bytes
           + 2 * max(tb, 8) * max(tn, 128) * 4
           + 2 * max(tn, 128) * 4)
    vmem_limit = int(min(max(2 * est, 8 << 20), 30 << 20))

    out = pl.pallas_call(
        _linear_kernel,
        out_shape=jax.ShapeDtypeStruct((B_pad, N_pad), jnp.float32),
        grid_spec=pltpu.PrefetchScalarGridSpec(
            num_scalar_prefetch=0,
            grid=grid,
            in_specs=[
                pl.BlockSpec((tb, tk), lambda b, n, k: (b, k)),   # x panel
                pl.BlockSpec((tn, tk), lambda b, n, k: (n, k)),   # W tile (N,K)
                pl.BlockSpec((1, tn), lambda b, n, k: (0, n)),    # bias tile
            ],
            out_specs=pl.BlockSpec((tb, tn), lambda b, n, k: (b, n)),  # resident acc
        ),
        compiler_params=pltpu.CompilerParams(
            dimension_semantics=("parallel", "parallel", "arbitrary"),
            vmem_limit_bytes=vmem_limit,
        ),
    )(x2d, w_prep, b_prep)

    if (B_pad != B) or (N_pad != N):
        out = out[:B, :N]
    return out


if __name__ == "__main__":
    # Small shapes consistent with the module: in_channels = C*H*W = 4*16*16 = 1024
    B, C, H, W = 2, 4, 16, 16
    num_classes = 4
    in_channels = C * H * W

    key = jax.random.PRNGKey(0)
    kx, kw, kb = jax.random.split(key, 3)

    x = jax.random.normal(kx, (B, C, H, W), dtype=jnp.float32)

    # Deterministic init mimicking nn.Linear's uniform(-1/sqrt(K), 1/sqrt(K)).
    bound = 1.0 / jnp.sqrt(jnp.float32(in_channels))
    weight = jax.random.uniform(
        kw, (num_classes, in_channels), minval=-bound, maxval=bound, dtype=jnp.float32
    )
    bias = jax.random.uniform(
        kb, (num_classes,), minval=-bound, maxval=bound, dtype=jnp.float32
    )

    y_ref = x.reshape(B, in_channels) @ weight.T + bias

    # --- f32 path (default): tight check vs reference -----------------------
    w_f32, b_f32, plan_f32 = prepare_single_linear(weight, bias)
    y = jax.block_until_ready(single_linear(x, w_f32, b_f32, plan_f32))
    assert y.shape == (B, num_classes)
    assert jnp.allclose(y, y_ref, atol=1e-4, rtol=1e-4), "f32 mismatch vs reference"

    # --- bf16 weights-at-rest path (hoisted cast/pad): loose check -----------
    w_bf, b_bf, plan_bf = prepare_single_linear(weight, bias, weight_dtype=jnp.bfloat16)
    y_bf = jax.block_until_ready(single_linear(x, w_bf, b_bf, plan_bf))
    assert jnp.allclose(y_bf, y_ref, atol=5e-2, rtol=5e-2), "bf16 mismatch vs reference"

    print("KERNEL_OK")
</pallas_src>

<mosaic_0001>
module attributes {stable_mosaic.version = 11 : i64} {
  func.func @_linear_kernel(%arg0: i32, %arg1: i32, %arg2: i32, %arg3: memref<2x1024xf32, #tpu.memory_space<vmem>>, %arg4: memref<4x1024xf32, #tpu.memory_space<vmem>>, %arg5: memref<1x4xf32, #tpu.memory_space<vmem>>, %arg6: memref<2x4xf32, #tpu.memory_space<vmem>>) attributes {dimension_semantics = [#tpu.dimension_semantics<parallel>, #tpu.dimension_semantics<parallel>, #tpu.dimension_semantics<arbitrary>], iteration_bounds = array<i64: 1, 1, 1>, scalar_prefetch = 0 : i64, scratch_operands = 0 : i64, tpu.core_type = #tpu.core_type<tc>, window_params = [{transform_indices = @transform_0, window_bounds = array<i64: 2, 1024>}, {transform_indices = @transform_1, window_bounds = array<i64: 4, 1024>}, {transform_indices = @transform_2, window_bounds = array<i64: 1, 4>}, {transform_indices = @transform_3, window_bounds = array<i64: 2, 4>}]} {
    %c0_i32 = arith.constant 0 : i32
    %0 = arith.cmpi eq, %arg2, %c0_i32 : i32
    %1 = arith.extui %0 : i1 to i32
    %c0_i32_0 = arith.constant 0 : i32
    %2 = arith.cmpi ne, %1, %c0_i32_0 : i32
    scf.if %2 {
      %c0_8 = arith.constant 0 : index
      %c0_9 = arith.constant 0 : index
      %9 = vector.load %arg5[%c0_8, %c0_9] : memref<1x4xf32, #tpu.memory_space<vmem>>, vector<1x4xf32>
      %10 = vector.shape_cast %9 : vector<1x4xf32> to vector<1x4xf32>
      %11 = vector.broadcast %10 : vector<1x4xf32> to vector<2x4xf32>
      %c0_10 = arith.constant 0 : index
      %c0_11 = arith.constant 0 : index
      %12 = vector.load %arg6[%c0_10, %c0_11] : memref<2x4xf32, #tpu.memory_space<vmem>>, vector<2x4xf32>
      tpu.vector_store %arg6[%c0_10, %c0_11], %11 {strides = array<i32>} : memref<2x4xf32, #tpu.memory_space<vmem>>, vector<2x4xf32>,
    } else {
    }
    %c0 = arith.constant 0 : index
    %c0_1 = arith.constant 0 : index
    %3 = vector.load %arg6[%c0, %c0_1] : memref<2x4xf32, #tpu.memory_space<vmem>>, vector<2x4xf32>
    %c0_2 = arith.constant 0 : index
    %c0_3 = arith.constant 0 : index
    %4 = vector.load %arg3[%c0_2, %c0_3] : memref<2x1024xf32, #tpu.memory_space<vmem>>, vector<2x1024xf32>
    %c0_4 = arith.constant 0 : index
    %c0_5 = arith.constant 0 : index
    %5 = vector.load %arg4[%c0_4, %c0_5] : memref<4x1024xf32, #tpu.memory_space<vmem>>, vector<4x1024xf32>
    %cst = arith.constant dense<0.000000e+00> : vector<2x4xf32>
    %6 = tpu.matmul %4, %5, %cst {dimension_numbers = #tpu.dot_dimension_numbers<[1], [1], [0], [0], [0, 0, 1, 0], [], []>} : vector<2x1024xf32>, vector<4x1024xf32>, vector<2x4xf32> -> vector<2x4xf32>
    %7 = arith.addf %3, %6 : vector<2x4xf32>
    %c0_6 = arith.constant 0 : index
    %c0_7 = arith.constant 0 : index
    %8 = vector.load %arg6[%c0_6, %c0_7] : memref<2x4xf32, #tpu.memory_space<vmem>>, vector<2x4xf32>
    tpu.vector_store %arg6[%c0_6, %c0_7], %7 {strides = array<i32>} : memref<2x4xf32, #tpu.memory_space<vmem>>, vector<2x4xf32>,
    return
  }
  func.func @transform_0(%arg0: i32, %arg1: i32, %arg2: i32) -> (i32, i32) {
    %c0_i32 = arith.constant 0 : i32
    return %arg0, %arg2 : i32, i32
  }
  func.func @transform_1(%arg0: i32, %arg1: i32, %arg2: i32) -> (i32, i32) {
    %c0_i32 = arith.constant 0 : i32
    return %arg1, %arg2 : i32, i32
  }
  func.func @transform_2(%arg0: i32, %arg1: i32, %arg2: i32) -> (i32, i32) {
    %c0_i32 = arith.constant 0 : i32
    %c0_i32_0 = arith.constant 0 : i32
    return %c0_i32, %arg1 : i32, i32
  }
  func.func @transform_3(%arg0: i32, %arg1: i32, %arg2: i32) -> (i32, i32) {
    %c0_i32 = arith.constant 0 : i32
    return %arg0, %arg1 : i32, i32
  }
}

</mosaic_0001>

<llo_original>
// kernel: tpu_custom_call.1
$region0: #{tpu_custom_call.1}
  #allocation0 [shape = 'u32[]', space=smem, size = 0x4, offset = 0x4, fixed_abs, tag = 'smem constant byte address 0x4 - core index']
  #allocation1 [shape = 'u32[72,128]{1,0:T(1,128)}', space=vmem, size = 0x9000, scoped, tag = 'internal scratch']
  %s0 = inlined_call_operand.hbm [shape: f32[2,1024], index: 0, kind: input, shape index: {}]
  %s1 = inlined_call_operand.hbm [shape: f32[4,1024], index: 1, kind: input, shape index: {}]
  %s2 = inlined_call_operand.vmem [shape: f32[1,4], index: 2, kind: input, shape index: {}]
  %s3 = inlined_call_operand.hbm [shape: f32[2,4], index: 3, kind: output, shape index: {}]
  %s4 = sld [smem:[#allocation0]]
  $region34: #{tpu_custom_call.1} parent=0
    _
  %s6 = ssub.s32 1, %s4
  %s7 = scalar_select 0, %s6, %s4
  $region1: #{tpu_custom_call.1} parent=0
    #allocation2 [shape = 'u8[8192]{0}', space=vmem, size = 0x2000, scoped, tag = 'input window, operand 0, single buffered']
    #allocation3 [shape = 's32[1]{0}', space=sflag, size = 0x4, scoped, tag = 'scoped memory for tpu_custom_call.1']
    #allocation4 [shape = 's32[1]{0}', space=sflag, size = 0x4, scoped, tag = 'scoped memory for tpu_custom_call.1']
    #allocation5 [shape = 'u8[16384]{0}', space=vmem, size = 0x4000, scoped, tag = 'input window, operand 1, single buffered']
    #allocation6 [shape = 's32[1]{0}', space=sflag, size = 0x4, scoped, tag = 'scoped memory for tpu_custom_call.1']
    #allocation7 [shape = 'u8[1024]{0}', space=vmem, size = 0x400, scoped, tag = 'output window, operand 0, single buffered']
    %8 = vsyncpa [#allocation3], 0
    %9 = vsyncpa [#allocation6], 0
    %10 = vsyncpa [#allocation4], 0
    // Predicated region
    $region2: #{tpu_custom_call.1} parent=1 // pred_check
      _
    $region3: #{tpu_custom_call.1} parent=1 // pred_check_branch
      %12 = sbr.rel (0) target = $region5
    $region4: #{tpu_custom_call.1} parent=1 // pred_region
      %14 = vsyncadd [#allocation3], 0
      %s16 = sshll.u32 %s0, 4
      %s17 = int_to_ptr.hbm [resolvable:$true] %s16
      %s18 = sshll.u32 [#allocation2], 4
      %s19 = int_to_ptr.vmem [resolvable:$true] %s18
      %21 = dma.hbm_to_vmem [thread:$0]  %s17, 256, %s19, [#allocation3]
    $region5: #{tpu_custom_call.1} parent=1 // pred_fallthru
      _
    // Predicated region
    $region6: #{tpu_custom_call.1} parent=1 // pred_check
      _
    $region7: #{tpu_custom_call.1} parent=1 // pred_check_branch
      %23 = sbr.rel (0) target = $region9
    $region8: #{tpu_custom_call.1} parent=1 // pred_region
      %25 = vsyncadd [#allocation6], 0
      %s27 = sshll.u32 %s1, 4
      %s28 = int_to_ptr.hbm [resolvable:$true] %s27
      %s29 = sshll.u32 [#allocation5], 4
      %s30 = int_to_ptr.vmem [resolvable:$true] %s29
      %32 = dma.hbm_to_vmem [thread:$0]  %s28, 512, %s30, [#allocation6]
    $region9: #{tpu_custom_call.1} parent=1 // pred_fallthru
      _
    // Predicated region
    $region10: #{tpu_custom_call.1} parent=1 // pred_check
      _
    $region11: #{tpu_custom_call.1} parent=1 // pred_check_branch
      %34 = sbr.rel (0) target = $region13
    $region12: #{tpu_custom_call.1} parent=1 // pred_region
      _
    $region13: #{tpu_custom_call.1} parent=1 // pred_fallthru
      _
    // Predicated region
    $region14: #{tpu_custom_call.1} parent=1 // pred_check
      _
    $region15: #{tpu_custom_call.1} parent=1 // pred_check_branch
      %36 = sbr.rel (0) target = $region17
    $region16: #{tpu_custom_call.1} parent=1 // pred_region
      %38 = dma.done [#allocation3], 256
    $region17: #{tpu_custom_call.1} parent=1 // pred_fallthru
      _
    // Predicated region
    $region18: #{tpu_custom_call.1} parent=1 // pred_check
      _
    $region19: #{tpu_custom_call.1} parent=1 // pred_check_branch
      %40 = sbr.rel (0) target = $region21
    $region20: #{tpu_custom_call.1} parent=1 // pred_region
      %42 = dma.done [#allocation6], 512
    $region21: #{tpu_custom_call.1} parent=1 // pred_fallthru
      _
    %p43 = scmp.eq.s32.totalorder 0, 0
    // Predicated region
    $region22: #{tpu_custom_call.1} parent=1 // pred_check
      %p44 = pneg %p43
    $region23: #{tpu_custom_call.1} parent=1 // pred_check_branch
      %46 = sbr.rel (%p44) target = $region25
    $region24: #{tpu_custom_call.1} parent=1 // pred_region
      %v47 = vld [vmem:[%s2] sm:$0x1]
      %v49 = vperm.slane %v47, 0
      %vm51 = vcmask 25600
      %52 = vst.msk [vmem:[#allocation7] sm:$0x3] %vm51, %v49
    $region25: #{tpu_custom_call.1} parent=1 // pred_fallthru
      _
    %v53 = vld [vmem:[#allocation7] sm:$0x3]
    %v54 = vld [vmem:[#allocation2] sm:$0xff]
    %v55 = vld [vmem:[#allocation2 + $0x8] sm:$0xff]
    %v56 = vld [vmem:[#allocation5] sm:$0xff]
    %v57 = vld [vmem:[#allocation5 + $0x8] sm:$0xff]
    %v58 = vld [vmem:[#allocation5 + $0x10] sm:$0xff]
    %v59 = vld [vmem:[#allocation5 + $0x18] sm:$0xff]
    %62 = vst [vmem:[#allocation1] ss:$4 sm:$0xff] %v54
    %s63 = scalar_lea.vmem [#allocation1], 32
    %64 = vst [vmem:[%s63] ss:$4 sm:$0xff] %v55
    %v65 = vld.sshfl [vmem:[#allocation1] sm:$0xff pattern:$0x73625140]
    %v66 = vld.sshfl [vmem:[#allocation1 + $0x8] sm:$0xff pattern:$0x73625140]
    %v67 = vld.sshfl [vmem:[#allocation1 + $0x10] sm:$0xff pattern:$0x73625140]
    %v68 = vld.sshfl [vmem:[#allocation1 + $0x18] sm:$0xff pattern:$0x73625140]
    %v69 = vld.sshfl [vmem:[#allocation1 + $0x20] sm:$0xff pattern:$0x73625140]
    %v70 = vld.sshfl [vmem:[#allocation1 + $0x28] sm:$0xff pattern:$0x73625140]
    %v71 = vld.sshfl [vmem:[#allocation1 + $0x30] sm:$0xff pattern:$0x73625140]
    %v72 = vld.sshfl [vmem:[#allocation1 + $0x38] sm:$0xff pattern:$0x73625140]
    %85 = vst [vmem:[#allocation1] ss:$2 sm:$0xff] %v56
    %s86 = scalar_lea.vmem [#allocation1], 16
    %87 = vst [vmem:[%s86] ss:$2 sm:$0xff] %v57
    %s88 = scalar_lea.vmem [#allocation1], 32
    %89 = vst [vmem:[%s88] ss:$2 sm:$0xff] %v58
    %s90 = scalar_lea.vmem [#allocation1], 48
    %91 = vst [vmem:[%s90] ss:$2 sm:$0xff] %v59
    %v92 = vld.sshfl [vmem:[#allocation1] sm:$0xff pattern:$0x75316420]
    %v93 = vld.sshfl [vmem:[#allocation1 + $0x8] sm:$0xff pattern:$0x75316420]
    %v94 = vld.sshfl [vmem:[#allocation1 + $0x10] sm:$0xff pattern:$0x75316420]
    %v95 = vld.sshfl [vmem:[#allocation1 + $0x18] sm:$0xff pattern:$0x75316420]
    %v96 = vld.sshfl [vmem:[#allocation1 + $0x20] sm:$0xff pattern:$0x75316420]
    %v97 = vld.sshfl [vmem:[#allocation1 + $0x28] sm:$0xff pattern:$0x75316420]
    %v98 = vld.sshfl [vmem:[#allocation1 + $0x30] sm:$0xff pattern:$0x75316420]
    %v99 = vld.sshfl [vmem:[#allocation1 + $0x38] sm:$0xff pattern:$0x75316420]
    %108 = vmatpush.xpose.msra.mxu0 0.0
    %109 = vmatpush.xpose.msra.mxu0 0.0
    %110 = vmatpush.xpose.msra.mxu0 0.0
    %111 = vmatpush.xpose.msra.mxu0 0.0
    %112 = vmatpush.xpose.msra.mxu0 0.0
    %113 = vmatpush.xpose.msra.mxu0 0.0
    %114 = vmatpush.xpose.msra.mxu0 0.0
    %115 = vmatpush.xpose.msra.mxu0 0.0
    %116 = vmatpush.xpose.msra.mxu0 0.0
    %117 = vmatpush.xpose.msra.mxu0 0.0
    %118 = vmatpush.xpose.msra.mxu0 0.0
    %119 = vmatpush.xpose.msra.mxu0 0.0
    %120 = vmatpush.xpose.msra.mxu0 0.0
    %121 = vmatpush.xpose.msra.mxu0 0.0
    %122 = vmatpush.xpose.msra.mxu0 0.0
    %123 = vmatpush.xpose.msra.mxu0 %v92
    %124 = vmatmul.f32.gmra.mxu0 %v65
    %v125 = vpop.f32.mrf.mxu0
    %v126 = vadd.f32 0.0, %v125
    %127 = vdwg.mxu0
    %128 = vmatpush.xpose.msra.mxu0 0.0
    %129 = vmatpush.xpose.msra.mxu0 0.0
    %130 = vmatpush.xpose.msra.mxu0 0.0
    %131 = vmatpush.xpose.msra.mxu0 0.0
    %132 = vmatpush.xpose.msra.mxu0 0.0
    %133 = vmatpush.xpose.msra.mxu0 0.0
    %134 = vmatpush.xpose.msra.mxu0 0.0
    %135 = vmatpush.xpose.msra.mxu0 0.0
    %136 = vmatpush.xpose.msra.mxu0 0.0
    %137 = vmatpush.xpose.msra.mxu0 0.0
    %138 = vmatpush.xpose.msra.mxu0 0.0
    %139 = vmatpush.xpose.msra.mxu0 0.0
    %140 = vmatpush.xpose.msra.mxu0 0.0
    %141 = vmatpush.xpose.msra.mxu0 0.0
    %142 = vmatpush.xpose.msra.mxu0 0.0
    %143 = vmatpush.xpose.msra.mxu0 %v93
    %144 = vmatmul.f32.gmra.mxu0 %v66
    %v145 = vpop.f32.mrf.mxu0
    %v146 = vadd.f32 %v126, %v145
    %147 = vdwg.mxu0
    %148 = vmatpush.xpose.msra.mxu0 0.0
    %149 = vmatpush.xpose.msra.mxu0 0.0
    %150 = vmatpush.xpose.msra.mxu0 0.0
    %151 = vmatpush.xpose.msra.mxu0 0.0
    %152 = vmatpush.xpose.msra.mxu0 0.0
    %153 = vmatpush.xpose.msra.mxu0 0.0
    %154 = vmatpush.xpose.msra.mxu0 0.0
    %155 = vmatpush.xpose.msra.mxu0 0.0
    %156 = vmatpush.xpose.msra.mxu0 0.0
    %157 = vmatpush.xpose.msra.mxu0 0.0
    %158 = vmatpush.xpose.msra.mxu0 0.0
    %159 = vmatpush.xpose.msra.mxu0 0.0
    %160 = vmatpush.xpose.msra.mxu0 0.0
    %161 = vmatpush.xpose.msra.mxu0 0.0
    %162 = vmatpush.xpose.msra.mxu0 0.0
    %163 = vmatpush.xpose.msra.mxu0 %v94
    %164 = vmatmul.f32.gmra.mxu0 %v67
    %v165 = vpop.f32.mrf.mxu0
    %v166 = vadd.f32 %v146, %v165
    %167 = vdwg.mxu0
    %168 = vmatpush.xpose.msra.mxu0 0.0
    %169 = vmatpush.xpose.msra.mxu0 0.0
    %170 = vmatpush.xpose.msra.mxu0 0.0
    %171 = vmatpush.xpose.msra.mxu0 0.0
    %172 = vmatpush.xpose.msra.mxu0 0.0
    %173 = vmatpush.xpose.msra.mxu0 0.0
    %174 = vmatpush.xpose.msra.mxu0 0.0
    %175 = vmatpush.xpose.msra.mxu0 0.0
    %176 = vmatpush.xpose.msra.mxu0 0.0
    %177 = vmatpush.xpose.msra.mxu0 0.0
    %178 = vmatpush.xpose.msra.mxu0 0.0
    %179 = vmatpush.xpose.msra.mxu0 0.0
    %180 = vmatpush.xpose.msra.mxu0 0.0
    %181 = vmatpush.xpose.msra.mxu0 0.0
    %182 = vmatpush.xpose.msra.mxu0 0.0
    %183 = vmatpush.xpose.msra.mxu0 %v95
    %184 = vmatmul.f32.gmra.mxu0 %v68
    %v185 = vpop.f32.mrf.mxu0
    %v186 = vadd.f32 %v166, %v185
    %187 = vdwg.mxu0
    %188 = vmatpush.xpose.msra.mxu0 0.0
    %189 = vmatpush.xpose.msra.mxu0 0.0
    %190 = vmatpush.xpose.msra.mxu0 0.0
    %191 = vmatpush.xpose.msra.mxu0 0.0
    %192 = vmatpush.xpose.msra.mxu0 0.0
    %193 = vmatpush.xpose.msra.mxu0 0.0
    %194 = vmatpush.xpose.msra.mxu0 0.0
    %195 = vmatpush.xpose.msra.mxu0 0.0
    %196 = vmatpush.xpose.msra.mxu0 0.0
    %197 = vmatpush.xpose.msra.mxu0 0.0
    %198 = vmatpush.xpose.msra.mxu0 0.0
    %199 = vmatpush.xpose.msra.mxu0 0.0
    %200 = vmatpush.xpose.msra.mxu0 0.0
    %201 = vmatpush.xpose.msra.mxu0 0.0
    %202 = vmatpush.xpose.msra.mxu0 0.0
    %203 = vmatpush.xpose.msra.mxu0 %v96
    %204 = vmatmul.f32.gmra.mxu0 %v69
    %v205 = vpop.f32.mrf.mxu0
    %v206 = vadd.f32 %v186, %v205
    %207 = vdwg.mxu0
    %208 = vmatpush.xpose.msra.mxu0 0.0
    %209 = vmatpush.xpose.msra.mxu0 0.0
    %210 = vmatpush.xpose.msra.mxu0 0.0
    %211 = vmatpush.xpose.msra.mxu0 0.0
    %212 = vmatpush.xpose.msra.mxu0 0.0
    %213 = vmatpush.xpose.msra.mxu0 0.0
    %214 = vmatpush.xpose.msra.mxu0 0.0
    %215 = vmatpush.xpose.msra.mxu0 0.0
    %216 = vmatpush.xpose.msra.mxu0 0.0
    %217 = vmatpush.xpose.msra.mxu0 0.0
    %218 = vmatpush.xpose.msra.mxu0 0.0
    %219 = vmatpush.xpose.msra.mxu0 0.0
    %220 = vmatpush.xpose.msra.mxu0 0.0
    %221 = vmatpush.xpose.msra.mxu0 0.0
    %222 = vmatpush.xpose.msra.mxu0 0.0
    %223 = vmatpush.xpose.msra.mxu0 %v97
    %224 = vmatmul.f32.gmra.mxu0 %v70
    %v225 = vpop.f32.mrf.mxu0
    %v226 = vadd.f32 %v206, %v225
    %227 = vdwg.mxu0
    %228 = vmatpush.xpose.msra.mxu0 0.0
    %229 = vmatpush.xpose.msra.mxu0 0.0
    %230 = vmatpush.xpose.msra.mxu0 0.0
    %231 = vmatpush.xpose.msra.mxu0 0.0
    %232 = vmatpush.xpose.msra.mxu0 0.0
    %233 = vmatpush.xpose.msra.mxu0 0.0
    %234 = vmatpush.xpose.msra.mxu0 0.0
    %235 = vmatpush.xpose.msra.mxu0 0.0
    %236 = vmatpush.xpose.msra.mxu0 0.0
    %237 = vmatpush.xpose.msra.mxu0 0.0
    %238 = vmatpush.xpose.msra.mxu0 0.0
    %239 = vmatpush.xpose.msra.mxu0 0.0
    %240 = vmatpush.xpose.msra.mxu0 0.0
    %241 = vmatpush.xpose.msra.mxu0 0.0
    %242 = vmatpush.xpose.msra.mxu0 0.0
    %243 = vmatpush.xpose.msra.mxu0 %v98
    %244 = vmatmul.f32.gmra.mxu0 %v71
    %v245 = vpop.f32.mrf.mxu0
    %v246 = vadd.f32 %v226, %v245
    %247 = vdwg.mxu0
    %248 = vmatpush.xpose.msra.mxu0 0.0
    %249 = vmatpush.xpose.msra.mxu0 0.0
    %250 = vmatpush.xpose.msra.mxu0 0.0
    %251 = vmatpush.xpose.msra.mxu0 0.0
    %252 = vmatpush.xpose.msra.mxu0 0.0
    %253 = vmatpush.xpose.msra.mxu0 0.0
    %254 = vmatpush.xpose.msra.mxu0 0.0
    %255 = vmatpush.xpose.msra.mxu0 0.0
    %256 = vmatpush.xpose.msra.mxu0 0.0
    %257 = vmatpush.xpose.msra.mxu0 0.0
    %258 = vmatpush.xpose.msra.mxu0 0.0
    %259 = vmatpush.xpose.msra.mxu0 0.0
    %260 = vmatpush.xpose.msra.mxu0 0.0
    %261 = vmatpush.xpose.msra.mxu0 0.0
    %262 = vmatpush.xpose.msra.mxu0 0.0
    %263 = vmatpush.xpose.msra.mxu0 %v99
    %264 = vmatmul.f32.gmra.mxu0 %v72
    %v265 = vpop.f32.mrf.mxu0
    %v266 = vadd.f32 %v246, %v265
    %267 = vdwg.mxu0
    %v268 = vadd.f32 %v53, %v266
    %vm269 = vcmask 25600
    %270 = vst.msk [vmem:[#allocation7] sm:$0x3] %vm269, %v268
    // Predicated region
    $region26: #{tpu_custom_call.1} parent=1 // pred_check
      _
    $region27: #{tpu_custom_call.1} parent=1 // pred_check_branch
      %272 = sbr.rel (0) target = $region29
    $region28: #{tpu_custom_call.1} parent=1 // pred_region
      %274 = vsyncadd [#allocation4], 0
      %s276 = sshll.u32 [#allocation7], 4
      %s277 = int_to_ptr.vmem [resolvable:$true] %s276
      %s278 = sshll.u32 %s3, 4
      %s279 = int_to_ptr.hbm [resolvable:$true] %s278
      %281 = dma.vmem_to_hbm [thread:$0]  %s277, 32, %s279, [#allocation4]
    $region29: #{tpu_custom_call.1} parent=1 // pred_fallthru
      _
    // Predicated region
    $region30: #{tpu_custom_call.1} parent=1 // pred_check
      _
    $region31: #{tpu_custom_call.1} parent=1 // pred_check_branch
      %283 = sbr.rel (0) target = $region33
    $region32: #{tpu_custom_call.1} parent=1 // pred_region
      %285 = dma.done [#allocation4], 32
    $region33: #{tpu_custom_call.1} parent=1 // pred_fallthru
      _
    %286 = vsyncpa [#allocation3], 1
    %287 = vsyncpa [#allocation6], 1
    %288 = vsyncpa [#allocation4], 1

</llo_original>
